<compile_context>
chip_gen: v6e
topology: v6e:2x2x1
jax: 0.10.0
libtpu: 0.0.40
codegen_flags: <defaults>
</compile_context>

<pallas_src>
import jax
import jax.numpy as jnp
from jax.experimental import pallas as pl
from jax.experimental.pallas import tpu as pltpu


# ----------------------------------------------------------------------------
# Kernel: one grid step == one CHUNK of GRU time steps (in-kernel fori_loop).
# PyTorch gate order (r, z, n), batch = 1.
# ----------------------------------------------------------------------------
def gru_seq_kernel(x_ref, h0_ref, wi_ref, wh_ref, bi_ref, bhn_ref,
                   out_ref, h_carry, gi_scratch):
    """
    x_ref     : (chunk, H)  inputs for this chunk (VMEM-resident block)
    h0_ref    : (1, H)      initial hidden state (resident)
    wi_ref    : (H, 3H)     input weights,     columns [W_ir^T | W_iz^T | W_in^T]
    wh_ref    : (H, 3H)     recurrent weights, columns [W_hr^T | W_hz^T | W_hn^T]
    bi_ref    : (1, 3H)     [b_ir+b_hr | b_iz+b_hz | b_in]
    bhn_ref   : (1, H)      b_hn (must stay inside the r*(...) term)
    out_ref   : (chunk, H)  per-step hidden outputs (resident; one DMA per chunk)
    h_carry   : (1, H) f32  VMEM scratch carrying hidden state across chunks
    gi_scratch: (chunk, 3H) f32 VMEM scratch for the hoisted input projection
    """
    H = h0_ref.shape[-1]
    chunk = x_ref.shape[0]

    @pl.when(pl.program_id(0) == 0)
    def _():
        h_carry[...] = h0_ref[...]

    # Hoisted input projection for the whole chunk: one M=chunk MXU matmul
    # instead of `chunk` M=1 matmuls on the serial critical path.
    gi_scratch[...] = (
        jnp.dot(x_ref[...], wi_ref[...], preferred_element_type=jnp.float32)
        + bi_ref[...])

    wh = wh_ref[...]            # (H, 3H)  lives in vregs for the whole chunk
    bhn = bhn_ref[...]          # (1, H)

    def step(t, h):
        gi = gi_scratch[pl.ds(t, 1), :]                            # (1, 3H)
        gh = jnp.dot(h, wh, preferred_element_type=jnp.float32)    # (1, 3H)
        r = jax.nn.sigmoid(gi[:, 0:H] + gh[:, 0:H])
        z = jax.nn.sigmoid(gi[:, H:2 * H] + gh[:, H:2 * H])
        n = jnp.tanh(gi[:, 2 * H:3 * H] + r * (gh[:, 2 * H:3 * H] + bhn))
        h_new = (1.0 - z) * n + z * h
        out_ref[pl.ds(t, 1), :] = h_new
        return h_new                                               # carry in vregs

    h_carry[...] = jax.lax.fori_loop(0, chunk, step, h_carry[...])


# ----------------------------------------------------------------------------
# Parameter construction / offline packing
# ----------------------------------------------------------------------------
def make_encoder_params(input_size, hidden_size, key):
    """Raw parameters mirroring torch.nn.GRU / Embedding shapes."""
    H = hidden_size
    k_emb, k_wih, k_whh, k_bih, k_bhh = jax.random.split(key, 5)
    bound = 1.0 / jnp.sqrt(jnp.float32(H))
    return {
        # Embedding exists in __init__ but is unused by forward (shape parity only).
        "embedding": jax.random.normal(k_emb, (input_size, H), jnp.float32),
        "weight_ih": jax.random.uniform(k_wih, (3 * H, H), jnp.float32, -bound, bound),
        "weight_hh": jax.random.uniform(k_whh, (3 * H, H), jnp.float32, -bound, bound),
        "bias_ih": jax.random.uniform(k_bih, (3 * H,), jnp.float32, -bound, bound),
        "bias_hh": jax.random.uniform(k_bhh, (3 * H,), jnp.float32, -bound, bound),
    }


def prepare_params(params):
    """One-time offline packing (all float32).

    wi  (H, 3H) : [W_ir^T | W_iz^T | W_in^T]
    wh  (H, 3H) : [W_hr^T | W_hz^T | W_hn^T]
    bi  (1, 3H) : [b_ir+b_hr | b_iz+b_hz | b_in]
    bhn (1, H)  : b_hn  (kept separate: it sits inside the r*(...) term)
    """
    w_ih = params["weight_ih"].astype(jnp.float32)   # (3H, H) rows [r; z; n]
    w_hh = params["weight_hh"].astype(jnp.float32)
    b_ih = params["bias_ih"].astype(jnp.float32)
    b_hh = params["bias_hh"].astype(jnp.float32)
    H = w_ih.shape[1]

    wi = jnp.transpose(w_ih)                         # (H, 3H)
    wh = jnp.transpose(w_hh)                         # (H, 3H)
    bi = jnp.concatenate([
        b_ih[:H] + b_hh[:H],
        b_ih[H:2 * H] + b_hh[H:2 * H],
        b_ih[2 * H:3 * H],
    ]).reshape(1, 3 * H)
    bhn = b_hh[2 * H:3 * H].reshape(1, H)

    return {"hidden_size": H, "wi": wi, "wh": wh, "bi": bi, "bhn": bhn}


# ----------------------------------------------------------------------------
# Fused-sequence pallas_call (also used for the single-step forward, T = 1)
# ----------------------------------------------------------------------------
def gru_sequence(packed, xs, h0, max_chunk=512):
    """Run all T GRU steps with one grid step per chunk (usually one total).

    xs : (T, H) float32 inputs, h0 : (1, H) float32 initial hidden.
    Returns (outputs (T, H), final_hidden (1, H)).
    """
    T, H = xs.shape
    assert H == packed["hidden_size"]
    assert max_chunk % 8 == 0

    if T <= max_chunk:
        chunk, padded_T = T, T                       # single full-extent block
    else:
        chunk = max_chunk                            # multiple of 8 -> legal block
        padded_T = pl.cdiv(T, chunk) * chunk
        if padded_T != T:
            xs = jnp.pad(xs, ((0, padded_T - T), (0, 0)))  # zero-pad tail steps
    num_chunks = padded_T // chunk

    outs = pl.pallas_call(
        gru_seq_kernel,
        out_shape=jax.ShapeDtypeStruct((padded_T, H), jnp.float32),
        grid_spec=pltpu.PrefetchScalarGridSpec(
            num_scalar_prefetch=0,
            grid=(num_chunks,),
            in_specs=[
                pl.BlockSpec((chunk, H), lambda c: (c, 0)),      # xs chunk
                pl.BlockSpec((1, H), lambda c: (0, 0)),          # h0 (resident)
                pl.BlockSpec((H, 3 * H), lambda c: (0, 0)),      # Wi (resident)
                pl.BlockSpec((H, 3 * H), lambda c: (0, 0)),      # Wh (resident)
                pl.BlockSpec((1, 3 * H), lambda c: (0, 0)),      # bi (resident)
                pl.BlockSpec((1, H), lambda c: (0, 0)),          # b_hn (resident)
            ],
            out_specs=pl.BlockSpec((chunk, H), lambda c: (c, 0)),
            scratch_shapes=[
                pltpu.VMEM((1, H), jnp.float32),                 # hidden carry
                pltpu.VMEM((chunk, 3 * H), jnp.float32),         # hoisted Gi
            ],
        ),
        compiler_params=pltpu.CompilerParams(
            dimension_semantics=("arbitrary",)),                 # recurrence -> sequential
    )(xs, h0, packed["wi"], packed["wh"], packed["bi"], packed["bhn"])

    outs = outs[:T]
    return outs, outs[T - 1:T]                       # final hidden == last output row


# ----------------------------------------------------------------------------
# PyTorch-equivalent forward (seq_len = 1, batch = 1)
# ----------------------------------------------------------------------------
def encoder_forward(packed, inp, hidden):
    """Matches Encoder.forward: returns (output, hidden), each (1, 1, H)."""
    H = packed["hidden_size"]
    x = jnp.reshape(inp, (1, -1)).astype(jnp.float32)      # input.view(1, 1, -1).float()
    h = jnp.reshape(hidden, (1, -1)).astype(jnp.float32)
    outs, h_final = gru_sequence(packed, x, h)
    return outs.reshape(1, 1, H), h_final.reshape(1, 1, H)


def init_hidden(hidden_size):
    return jnp.zeros((1, 1, hidden_size), jnp.float32)


# ----------------------------------------------------------------------------
# Pure-JAX reference of a PyTorch GRU step (sanity check)
# ----------------------------------------------------------------------------
def _reference_step(params, x, h):
    H = params["weight_ih"].shape[1]
    gi = x @ params["weight_ih"].T + params["bias_ih"]
    gh = h @ params["weight_hh"].T + params["bias_hh"]
    r = jax.nn.sigmoid(gi[:, :H] + gh[:, :H])
    z = jax.nn.sigmoid(gi[:, H:2 * H] + gh[:, H:2 * H])
    n = jnp.tanh(gi[:, 2 * H:] + r * gh[:, 2 * H:])
    return (1.0 - z) * n + z * h


if __name__ == "__main__":
    input_size = 16    # vocab size (Embedding rows; unused by forward)
    hidden_size = 32   # H

    key = jax.random.PRNGKey(0)
    k_params, k_input, k_seq = jax.random.split(key, 3)

    params = make_encoder_params(input_size, hidden_size, k_params)
    packed = prepare_params(params)   # one-time offline packing (f32)

    # ---- single-step forward (exactly the PyTorch module's forward) ----
    inp = jax.random.normal(k_input, (1, 1, hidden_size), jnp.float32)
    hidden = init_hidden(hidden_size)

    output, new_hidden = encoder_forward(packed, inp, hidden)
    output = jax.block_until_ready(output)
    new_hidden = jax.block_until_ready(new_hidden)

    ref = _reference_step(params, inp.reshape(1, -1), hidden.reshape(1, -1))
    assert output.shape == (1, 1, hidden_size)
    assert new_hidden.shape == (1, 1, hidden_size)
    assert jnp.allclose(output.reshape(1, -1), ref, atol=1e-5, rtol=1e-5)
    assert jnp.allclose(output, new_hidden)

    # ---- fused multi-step path: one grid step for the whole sequence ----
    T = 8
    xs = jax.random.normal(k_seq, (T, hidden_size), jnp.float32)
    h0 = jnp.zeros((1, hidden_size), jnp.float32)
    outs, h_final = gru_sequence(packed, xs, h0)
    outs = jax.block_until_ready(outs)
    h_final = jax.block_until_ready(h_final)

    h_ref = h0
    ref_rows = []
    for t in range(T):
        h_ref = _reference_step(params, xs[t:t + 1], h_ref)
        ref_rows.append(h_ref)
    ref_seq = jnp.concatenate(ref_rows, axis=0)            # (T, H)
    assert jnp.allclose(outs, ref_seq, atol=1e-5, rtol=1e-5)
    assert jnp.allclose(h_final, ref_seq[-1:], atol=1e-5, rtol=1e-5)

    # ---- exercise the chunked + padded path (T not a multiple of chunk) ----
    T2 = 20
    xs2 = jax.random.normal(jax.random.PRNGKey(7), (T2, hidden_size), jnp.float32)
    outs2, h_final2 = gru_sequence(packed, xs2, h0, max_chunk=8)
    outs2 = jax.block_until_ready(outs2)
    h_final2 = jax.block_until_ready(h_final2)

    h_ref = h0
    ref_rows = []
    for t in range(T2):
        h_ref = _reference_step(params, xs2[t:t + 1], h_ref)
        ref_rows.append(h_ref)
    ref_seq2 = jnp.concatenate(ref_rows, axis=0)
    assert jnp.allclose(outs2, ref_seq2, atol=1e-5, rtol=1e-5)
    assert jnp.allclose(h_final2, ref_seq2[-1:], atol=1e-5, rtol=1e-5)

    print("KERNEL_OK")
</pallas_src>

<mosaic_0001>
module attributes {stable_mosaic.version = 11 : i64} {
  func.func @gru_seq_kernel(%arg0: i32, %arg1: memref<1x32xf32, #tpu.memory_space<vmem>>, %arg2: memref<1x32xf32, #tpu.memory_space<vmem>>, %arg3: memref<32x96xf32, #tpu.memory_space<vmem>>, %arg4: memref<32x96xf32, #tpu.memory_space<vmem>>, %arg5: memref<1x96xf32, #tpu.memory_space<vmem>>, %arg6: memref<1x32xf32, #tpu.memory_space<vmem>>, %arg7: memref<1x32xf32, #tpu.memory_space<vmem>>, %arg8: memref<1x32xf32, #tpu.memory_space<vmem>>, %arg9: memref<1x96xf32, #tpu.memory_space<vmem>>) attributes {dimension_semantics = [#tpu.dimension_semantics<arbitrary>], iteration_bounds = array<i64: 1>, scalar_prefetch = 0 : i64, scratch_operands = 2 : i64, tpu.core_type = #tpu.core_type<tc>, window_params = [{transform_indices = @transform_0, window_bounds = array<i64: 1, 32>}, {pipeline_mode = #tpu.pipeline_mode<synchronous>, transform_indices = @transform_1, window_bounds = array<i64: 1, 32>}, {pipeline_mode = #tpu.pipeline_mode<synchronous>, transform_indices = @transform_2, window_bounds = array<i64: 32, 96>}, {pipeline_mode = #tpu.pipeline_mode<synchronous>, transform_indices = @transform_3, window_bounds = array<i64: 32, 96>}, {pipeline_mode = #tpu.pipeline_mode<synchronous>, transform_indices = @transform_4, window_bounds = array<i64: 1, 96>}, {pipeline_mode = #tpu.pipeline_mode<synchronous>, transform_indices = @transform_5, window_bounds = array<i64: 1, 32>}, {transform_indices = @transform_6, window_bounds = array<i64: 1, 32>}]} {
    %c0_i32 = arith.constant 0 : i32
    %0 = arith.cmpi eq, %arg0, %c0_i32 : i32
    %1 = arith.extui %0 : i1 to i32
    %c0_i32_0 = arith.constant 0 : i32
    %2 = arith.cmpi ne, %1, %c0_i32_0 : i32
    scf.if %2 {
      %c0_23 = arith.constant 0 : index
      %c0_24 = arith.constant 0 : index
      %45 = vector.load %arg2[%c0_23, %c0_24] : memref<1x32xf32, #tpu.memory_space<vmem>>, vector<1x32xf32>
      %c0_25 = arith.constant 0 : index
      %c0_26 = arith.constant 0 : index
      %46 = vector.load %arg8[%c0_25, %c0_26] : memref<1x32xf32, #tpu.memory_space<vmem>>, vector<1x32xf32>
      tpu.vector_store %arg8[%c0_25, %c0_26], %45 {strides = array<i32>} : memref<1x32xf32, #tpu.memory_space<vmem>>, vector<1x32xf32>,
    } else {
    }
    %c0 = arith.constant 0 : index
    %c0_1 = arith.constant 0 : index
    %3 = vector.load %arg1[%c0, %c0_1] : memref<1x32xf32, #tpu.memory_space<vmem>>, vector<1x32xf32>
    %c0_2 = arith.constant 0 : index
    %c0_3 = arith.constant 0 : index
    %4 = vector.load %arg3[%c0_2, %c0_3] : memref<32x96xf32, #tpu.memory_space<vmem>>, vector<32x96xf32>
    %cst = arith.constant dense<0.000000e+00> : vector<1x96xf32>
    %5 = tpu.matmul %3, %4, %cst {dimension_numbers = #tpu.dot_dimension_numbers<[1], [0], [0], [1], [0, 0, 1, 1], [], []>} : vector<1x32xf32>, vector<32x96xf32>, vector<1x96xf32> -> vector<1x96xf32>
    %c0_4 = arith.constant 0 : index
    %c0_5 = arith.constant 0 : index
    %6 = vector.load %arg5[%c0_4, %c0_5] : memref<1x96xf32, #tpu.memory_space<vmem>>, vector<1x96xf32>
    %7 = arith.addf %5, %6 : vector<1x96xf32>
    %c0_6 = arith.constant 0 : index
    %c0_7 = arith.constant 0 : index
    %8 = vector.load %arg9[%c0_6, %c0_7] : memref<1x96xf32, #tpu.memory_space<vmem>>, vector<1x96xf32>
    tpu.vector_store %arg9[%c0_6, %c0_7], %7 {strides = array<i32>} : memref<1x96xf32, #tpu.memory_space<vmem>>, vector<1x96xf32>,
    %c0_8 = arith.constant 0 : index
    %c0_9 = arith.constant 0 : index
    %9 = vector.load %arg4[%c0_8, %c0_9] : memref<32x96xf32, #tpu.memory_space<vmem>>, vector<32x96xf32>
    %c0_10 = arith.constant 0 : index
    %c0_11 = arith.constant 0 : index
    %10 = vector.load %arg6[%c0_10, %c0_11] : memref<1x32xf32, #tpu.memory_space<vmem>>, vector<1x32xf32>
    %c0_12 = arith.constant 0 : index
    %c0_13 = arith.constant 0 : index
    %11 = vector.load %arg8[%c0_12, %c0_13] : memref<1x32xf32, #tpu.memory_space<vmem>>, vector<1x32xf32>
    %c0_i32_14 = arith.constant 0 : i32
    %12 = arith.index_cast %c0_i32_14 : i32 to index
    %c0_15 = arith.constant 0 : index
    %13 = vector.load %arg9[%12, %c0_15] : memref<1x96xf32, #tpu.memory_space<vmem>>, vector<1x96xf32>
    %cst_16 = arith.constant dense<0.000000e+00> : vector<1x96xf32>
    %14 = tpu.matmul %11, %9, %cst_16 {dimension_numbers = #tpu.dot_dimension_numbers<[1], [0], [0], [1], [0, 0, 1, 1], [], []>} : vector<1x32xf32>, vector<32x96xf32>, vector<1x96xf32> -> vector<1x96xf32>
    %15 = vector.extract_strided_slice %13 {offsets = [0, 0], sizes = [1, 32], strides = [1, 1]} : vector<1x96xf32> to vector<1x32xf32>
    %16 = vector.extract_strided_slice %14 {offsets = [0, 0], sizes = [1, 32], strides = [1, 1]} : vector<1x96xf32> to vector<1x32xf32>
    %17 = arith.addf %15, %16 : vector<1x32xf32>
    %18 = arith.negf %17 : vector<1x32xf32>
    %19 = math.exp %18 : vector<1x32xf32>
    %cst_17 = arith.constant 1.000000e+00 : f32
    %20 = vector.broadcast %cst_17 : f32 to vector<1x32xf32>
    %21 = arith.addf %20, %19 : vector<1x32xf32>
    %22 = arith.divf %20, %21 : vector<1x32xf32>
    %23 = vector.extract_strided_slice %13 {offsets = [0, 32], sizes = [1, 32], strides = [1, 1]} : vector<1x96xf32> to vector<1x32xf32>
    %24 = vector.extract_strided_slice %14 {offsets = [0, 32], sizes = [1, 32], strides = [1, 1]} : vector<1x96xf32> to vector<1x32xf32>
    %25 = arith.addf %23, %24 : vector<1x32xf32>
    %26 = arith.negf %25 : vector<1x32xf32>
    %27 = math.exp %26 : vector<1x32xf32>
    %cst_18 = arith.constant 1.000000e+00 : f32
    %28 = vector.broadcast %cst_18 : f32 to vector<1x32xf32>
    %29 = arith.addf %28, %27 : vector<1x32xf32>
    %30 = arith.divf %28, %29 : vector<1x32xf32>
    %31 = vector.extract_strided_slice %13 {offsets = [0, 64], sizes = [1, 32], strides = [1, 1]} : vector<1x96xf32> to vector<1x32xf32>
    %32 = vector.extract_strided_slice %14 {offsets = [0, 64], sizes = [1, 32], strides = [1, 1]} : vector<1x96xf32> to vector<1x32xf32>
    %33 = arith.addf %32, %10 : vector<1x32xf32>
    %34 = arith.mulf %22, %33 : vector<1x32xf32>
    %35 = arith.addf %31, %34 : vector<1x32xf32>
    %36 = math.tanh %35 : vector<1x32xf32>
    %cst_19 = arith.constant 1.000000e+00 : f32
    %37 = vector.broadcast %cst_19 : f32 to vector<1x32xf32>
    %38 = arith.subf %37, %30 : vector<1x32xf32>
    %39 = arith.mulf %38, %36 : vector<1x32xf32>
    %40 = arith.mulf %30, %11 : vector<1x32xf32>
    %41 = arith.addf %39, %40 : vector<1x32xf32>
    %42 = arith.index_cast %c0_i32_14 : i32 to index
    %c0_20 = arith.constant 0 : index
    %43 = vector.load %arg7[%42, %c0_20] : memref<1x32xf32, #tpu.memory_space<vmem>>, vector<1x32xf32>
    tpu.vector_store %arg7[%42, %c0_20], %41 {strides = array<i32>} : memref<1x32xf32, #tpu.memory_space<vmem>>, vector<1x32xf32>,
    %c1_i32 = arith.constant 1 : i32
    %c0_21 = arith.constant 0 : index
    %c0_22 = arith.constant 0 : index
    %44 = vector.load %arg8[%c0_21, %c0_22] : memref<1x32xf32, #tpu.memory_space<vmem>>, vector<1x32xf32>
    tpu.vector_store %arg8[%c0_21, %c0_22], %41 {strides = array<i32>} : memref<1x32xf32, #tpu.memory_space<vmem>>, vector<1x32xf32>,
    return
  }
  func.func @transform_0(%arg0: i32) -> (i32, i32) {
    %c0_i32 = arith.constant 0 : i32
    %c0_i32_0 = arith.constant 0 : i32
    return %arg0, %c0_i32 : i32, i32
  }
  func.func @transform_1(%arg0: i32) -> (i32, i32) {
    %c0_i32 = arith.constant 0 : i32
    %c0_i32_0 = arith.constant 0 : i32
    %c0_i32_1 = arith.constant 0 : i32
    return %c0_i32, %c0_i32_0 : i32, i32
  }
  func.func @transform_2(%arg0: i32) -> (i32, i32) {
    %c0_i32 = arith.constant 0 : i32
    %c0_i32_0 = arith.constant 0 : i32
    %c0_i32_1 = arith.constant 0 : i32
    return %c0_i32, %c0_i32_0 : i32, i32
  }
  func.func @transform_3(%arg0: i32) -> (i32, i32) {
    %c0_i32 = arith.constant 0 : i32
    %c0_i32_0 = arith.constant 0 : i32
    %c0_i32_1 = arith.constant 0 : i32
    return %c0_i32, %c0_i32_0 : i32, i32
  }
  func.func @transform_4(%arg0: i32) -> (i32, i32) {
    %c0_i32 = arith.constant 0 : i32
    %c0_i32_0 = arith.constant 0 : i32
    %c0_i32_1 = arith.constant 0 : i32
    return %c0_i32, %c0_i32_0 : i32, i32
  }
  func.func @transform_5(%arg0: i32) -> (i32, i32) {
    %c0_i32 = arith.constant 0 : i32
    %c0_i32_0 = arith.constant 0 : i32
    %c0_i32_1 = arith.constant 0 : i32
    return %c0_i32, %c0_i32_0 : i32, i32
  }
  func.func @transform_6(%arg0: i32) -> (i32, i32) {
    %c0_i32 = arith.constant 0 : i32
    %c0_i32_0 = arith.constant 0 : i32
    return %arg0, %c0_i32 : i32, i32
  }
}

</mosaic_0001>

<llo_original>
// kernel: tpu_custom_call.1
$region0: #{tpu_custom_call.1}
  #allocation0 [shape = 'u32[]', space=smem, size = 0x4, offset = 0x4, fixed_abs, tag = 'smem constant byte address 0x4 - core index']
  #allocation1 [shape = 'u32[144,128]{1,0:T(1,128)}', space=vmem, size = 0x12000, scoped, tag = 'internal scratch']
  #allocation2 [shape = 'f32[1,32]{1,0:T(1,128)}', space=vmem, size = 0x200, scoped, tag = 'scratch operand']
  #allocation3 [shape = 'f32[1,96]{1,0:T(1,128)}', space=vmem, size = 0x200, scoped, tag = 'scratch operand']
  %s0 = inlined_call_operand.hbm [shape: f32[1,32], index: 0, kind: input, shape index: {}]
  %s1 = inlined_call_operand.vmem [shape: f32[1,32], index: 1, kind: input, shape index: {}]
  %s2 = inlined_call_operand.hbm [shape: f32[32,96], index: 2, kind: input, shape index: {}]
  %s3 = inlined_call_operand.hbm [shape: f32[32,96], index: 3, kind: input, shape index: {}]
  %s4 = inlined_call_operand.vmem [shape: f32[1,96], index: 4, kind: input, shape index: {}]
  %s5 = inlined_call_operand.vmem [shape: f32[1,32], index: 5, kind: input, shape index: {}]
  %s6 = inlined_call_operand.hbm [shape: f32[1,32], index: 6, kind: output, shape index: {}]
  %s7 = sld [smem:[#allocation0]]
  $region50: #{tpu_custom_call.1} parent=0
    _
  %s9 = ssub.s32 1, %s7
  %s10 = scalar_select 0, %s9, %s7
  $region1: #{tpu_custom_call.1} parent=0
    #allocation4 [shape = 'u8[512]{0}', space=vmem, size = 0x400, scoped, tag = 'input window, operand 0, single buffered']
    #allocation5 [shape = 's32[1]{0}', space=sflag, size = 0x4, scoped, tag = 'scoped memory for tpu_custom_call.1']
    #allocation6 [shape = 's32[1]{0}', space=sflag, size = 0x4, scoped, tag = 'scoped memory for tpu_custom_call.1']
    #allocation7 [shape = 'u8[16384]{0}', space=vmem, size = 0x4000, scoped, tag = 'input window, operand 2, single buffered']
    #allocation8 [shape = 's32[1]{0}', space=sflag, size = 0x4, scoped, tag = 'scoped memory for tpu_custom_call.1']
    #allocation9 [shape = 'u8[16384]{0}', space=vmem, size = 0x4000, scoped, tag = 'input window, operand 3, single buffered']
    #allocation10 [shape = 'u8[512]{0}', space=vmem, size = 0x400, scoped, tag = 'output window, operand 0, single buffered']
    %11 = vsyncpa [#allocation5], 0
    %12 = vsyncpa [#allocation8], 0
    %13 = vsyncpa [#allocation6], 0
    // Predicated region
    $region2: #{tpu_custom_call.1} parent=1 // pred_check
      _
    $region3: #{tpu_custom_call.1} parent=1 // pred_check_branch
      %15 = sbr.rel (0) target = $region5
    $region4: #{tpu_custom_call.1} parent=1 // pred_region
      %s17 = ssub.s32 16, 16
      %18 = vsyncadd [#allocation5], %s17
      %s20 = sshll.u32 [#allocation4], 4
      %s21 = int_to_ptr.vmem [resolvable:$true] %s20
      %23 = dma.hbm_to_vmem [thread:$0]  %s0, 16, %s21, [#allocation5]
    $region5: #{tpu_custom_call.1} parent=1 // pred_fallthru
      _
    // Predicated region
    $region6: #{tpu_custom_call.1} parent=1 // pred_check
      _
    $region7: #{tpu_custom_call.1} parent=1 // pred_check_branch
      %25 = sbr.rel (0) target = $region9
    $region8: #{tpu_custom_call.1} parent=1 // pred_region
      _
    $region9: #{tpu_custom_call.1} parent=1 // pred_fallthru
      _
    // Predicated region
    $region10: #{tpu_custom_call.1} parent=1 // pred_check
      _
    $region11: #{tpu_custom_call.1} parent=1 // pred_check_branch
      %27 = sbr.rel (0) target = $region13
    $region12: #{tpu_custom_call.1} parent=1 // pred_region
      %s29 = ssub.s32 512, 512
      %30 = vsyncadd [#allocation8], %s29
      %s31 = sshll.u32 [#allocation7], 4
      %s32 = int_to_ptr.vmem [resolvable:$true] %s31
      %37 = dma.hbm_to_vmem [thread:$0]  %s2, 512, %s32, [#allocation8], 128, 128, 8
    $region13: #{tpu_custom_call.1} parent=1 // pred_fallthru
      _
    // Predicated region
    $region14: #{tpu_custom_call.1} parent=1 // pred_check
      _
    $region15: #{tpu_custom_call.1} parent=1 // pred_check_branch
      %39 = sbr.rel (0) target = $region17
    $region16: #{tpu_custom_call.1} parent=1 // pred_region
      %s41 = ssub.s32 512, 512
      %42 = vsyncadd [#allocation8], %s41
      %s43 = sshll.u32 [#allocation9], 4
      %s44 = int_to_ptr.vmem [resolvable:$true] %s43
      %49 = dma.hbm_to_vmem [thread:$0]  %s3, 512, %s44, [#allocation8], 128, 128, 8
    $region17: #{tpu_custom_call.1} parent=1 // pred_fallthru
      _
    // Predicated region
    $region18: #{tpu_custom_call.1} parent=1 // pred_check
      _
    $region19: #{tpu_custom_call.1} parent=1 // pred_check_branch
      %51 = sbr.rel (0) target = $region21
    $region20: #{tpu_custom_call.1} parent=1 // pred_region
      _
    $region21: #{tpu_custom_call.1} parent=1 // pred_fallthru
      _
    // Predicated region
    $region22: #{tpu_custom_call.1} parent=1 // pred_check
      _
    $region23: #{tpu_custom_call.1} parent=1 // pred_check_branch
      %53 = sbr.rel (0) target = $region25
    $region24: #{tpu_custom_call.1} parent=1 // pred_region
      _
    $region25: #{tpu_custom_call.1} parent=1 // pred_fallthru
      _
    // Predicated region
    $region26: #{tpu_custom_call.1} parent=1 // pred_check
      _
    $region27: #{tpu_custom_call.1} parent=1 // pred_check_branch
      %55 = sbr.rel (0) target = $region29
    $region28: #{tpu_custom_call.1} parent=1 // pred_region
      %56 = dma.done [#allocation5], 16
    $region29: #{tpu_custom_call.1} parent=1 // pred_fallthru
      _
    // Predicated region
    $region30: #{tpu_custom_call.1} parent=1 // pred_check
      _
    $region31: #{tpu_custom_call.1} parent=1 // pred_check_branch
      %58 = sbr.rel (0) target = $region33
    $region32: #{tpu_custom_call.1} parent=1 // pred_region
      %59 = dma.done [#allocation8], 512
    $region33: #{tpu_custom_call.1} parent=1 // pred_fallthru
      _
    // Predicated region
    $region34: #{tpu_custom_call.1} parent=1 // pred_check
      _
    $region35: #{tpu_custom_call.1} parent=1 // pred_check_branch
      %61 = sbr.rel (0) target = $region37
    $region36: #{tpu_custom_call.1} parent=1 // pred_region
      %62 = dma.done [#allocation8], 512
    $region37: #{tpu_custom_call.1} parent=1 // pred_fallthru
      _
    %p63 = scmp.eq.s32.totalorder 0, 0
    // Predicated region
    $region38: #{tpu_custom_call.1} parent=1 // pred_check
      %p64 = pneg %p63
    $region39: #{tpu_custom_call.1} parent=1 // pred_check_branch
      %66 = sbr.rel (%p64) target = $region41
    $region40: #{tpu_custom_call.1} parent=1 // pred_region
      %v67 = vld [vmem:[%s1] sm:$0x1]
      %vm68 = vcmask 253952
      %69 = vst.msk [vmem:[#allocation2] sm:$0x1] %vm68, %v67
    $region41: #{tpu_custom_call.1} parent=1 // pred_fallthru
      _
    %v70 = vld [vmem:[#allocation4] sm:$0x1]
    %v71 = vld [vmem:[#allocation7] sm:$0xff]
    %v72 = vld [vmem:[#allocation7 + $0x8] sm:$0xff]
    %v73 = vld [vmem:[#allocation7 + $0x10] sm:$0xff]
    %v74 = vld [vmem:[#allocation7 + $0x18] sm:$0xff]
    %v75 = vld [vmem:[%s4] sm:$0x1]
    %vm76 = vcmask 261120
    %v78 = vsel %vm76, %v70, 0
    %80 = vmatprep.subr.mxu0 0.0
    %81 = vmatpush1.msra.mxu0 0.0
    %82 = vmatprep.subr.mxu0 0.0
    %83 = vmatpush1.msra.mxu0 0.0
    %84 = vmatprep.subr.mxu0 0.0
    %85 = vmatpush1.msra.mxu0 0.0
    %86 = vmatprep.subr.mxu0 0.0
    %87 = vmatpush1.msra.mxu0 0.0
    %88 = vmatprep.subr.mxu0 0.0
    %89 = vmatpush1.msra.mxu0 0.0
    %90 = vmatprep.subr.mxu0 0.0
    %91 = vmatpush1.msra.mxu0 0.0
    %92 = vmatprep.subr.mxu0 0.0
    %93 = vmatpush1.msra.mxu0 0.0
    %94 = vmatprep.subr.mxu0 0.0
    %95 = vmatpush1.msra.mxu0 0.0
    %96 = vmatprep.subr.mxu0 0.0
    %97 = vmatpush1.msra.mxu0 0.0
    %98 = vmatprep.subr.mxu0 0.0
    %99 = vmatpush1.msra.mxu0 0.0
    %100 = vmatprep.subr.mxu0 0.0
    %101 = vmatpush1.msra.mxu0 0.0
    %102 = vmatprep.subr.mxu0 0.0
    %103 = vmatpush1.msra.mxu0 0.0
    %104 = vmatprep.subr.mxu0 0.0
    %105 = vmatpush1.msra.mxu0 %v74
    %106 = vmatprep.subr.mxu0 0.0
    %107 = vmatpush1.msra.mxu0 %v73
    %108 = vmatprep.subr.mxu0 0.0
    %109 = vmatpush1.msra.mxu0 %v72
    %110 = vmatprep.subr.mxu0 0.0
    %111 = vmatpush1.msra.mxu0 %v71
    %112 = vmatprep.subr.mxu0 0.0
    %113 = vmatpush2.msra.mxu0 0.0
    %114 = vmatprep.subr.mxu0 0.0
    %115 = vmatpush2.msra.mxu0 0.0
    %116 = vmatprep.subr.mxu0 0.0
    %117 = vmatpush2.msra.mxu0 0.0
    %118 = vmatprep.subr.mxu0 0.0
    %119 = vmatpush2.msra.mxu0 0.0
    %120 = vmatprep.subr.mxu0 0.0
    %121 = vmatpush2.msra.mxu0 0.0
    %122 = vmatprep.subr.mxu0 0.0
    %123 = vmatpush2.msra.mxu0 0.0
    %124 = vmatprep.subr.mxu0 0.0
    %125 = vmatpush2.msra.mxu0 0.0
    %126 = vmatprep.subr.mxu0 0.0
    %127 = vmatpush2.msra.mxu0 0.0
    %128 = vmatprep.subr.mxu0 0.0
    %129 = vmatpush2.msra.mxu0 0.0
    %130 = vmatprep.subr.mxu0 0.0
    %131 = vmatpush2.msra.mxu0 0.0
    %132 = vmatprep.subr.mxu0 0.0
    %133 = vmatpush2.msra.mxu0 0.0
    %134 = vmatprep.subr.mxu0 0.0
    %135 = vmatpush2.msra.mxu0 0.0
    %136 = vmatprep.subr.mxu0 0.0
    %137 = vmatpush2.msra.mxu0 0.0
    %138 = vmatprep.subr.mxu0 0.0
    %139 = vmatpush2.msra.mxu0 0.0
    %140 = vmatprep.subr.mxu0 0.0
    %141 = vmatpush2.msra.mxu0 0.0
    %142 = vmatprep.subr.mxu0 0.0
    %143 = vmatpush2.msra.mxu0 0.0
    %144 = vmatprep.mubr.f32.mxu0 0.0
    %145 = vmatmul.mubr.f32.gmra.mxu0 %v78
    %v146 = vpop.f32.mrf.mxu0
    %v147 = vadd.f32 %v75, %v146
    %v148 = vpop.f32.mrf.mxu0
    %149 = vdwg.mxu0
    %vm150 = vcmask 778240
    %151 = vst.msk [vmem:[#allocation3] sm:$0x1] %vm150, %v147
    %v152 = vld [vmem:[#allocation9] sm:$0xff]
    %v153 = vld [vmem:[#allocation9 + $0x8] sm:$0xff]
    %v154 = vld [vmem:[#allocation9 + $0x10] sm:$0xff]
    %v155 = vld [vmem:[#allocation9 + $0x18] sm:$0xff]
    %v156 = vld [vmem:[%s5] sm:$0x1]
    %v157 = vld [vmem:[#allocation2] sm:$0x1]
    %v158 = vld [vmem:[#allocation3] sm:$0x1]
    %v160 = vsel %vm76, %v157, 0
    %162 = vmatprep.subr.mxu0 0.0
    %163 = vmatpush1.msra.mxu0 0.0
    %164 = vmatprep.subr.mxu0 0.0
    %165 = vmatpush1.msra.mxu0 0.0
    %166 = vmatprep.subr.mxu0 0.0
    %167 = vmatpush1.msra.mxu0 0.0
    %168 = vmatprep.subr.mxu0 0.0
    %169 = vmatpush1.msra.mxu0 0.0
    %170 = vmatprep.subr.mxu0 0.0
    %171 = vmatpush1.msra.mxu0 0.0
    %172 = vmatprep.subr.mxu0 0.0
    %173 = vmatpush1.msra.mxu0 0.0
    %174 = vmatprep.subr.mxu0 0.0
    %175 = vmatpush1.msra.mxu0 0.0
    %176 = vmatprep.subr.mxu0 0.0
    %177 = vmatpush1.msra.mxu0 0.0
    %178 = vmatprep.subr.mxu0 0.0
    %179 = vmatpush1.msra.mxu0 0.0
    %180 = vmatprep.subr.mxu0 0.0
    %181 = vmatpush1.msra.mxu0 0.0
    %182 = vmatprep.subr.mxu0 0.0
    %183 = vmatpush1.msra.mxu0 0.0
    %184 = vmatprep.subr.mxu0 0.0
    %185 = vmatpush1.msra.mxu0 0.0
    %186 = vmatprep.subr.mxu0 0.0
    %187 = vmatpush1.msra.mxu0 %v155
    %188 = vmatprep.subr.mxu0 0.0
    %189 = vmatpush1.msra.mxu0 %v154
    %190 = vmatprep.subr.mxu0 0.0
    %191 = vmatpush1.msra.mxu0 %v153
    %192 = vmatprep.subr.mxu0 0.0
    %193 = vmatpush1.msra.mxu0 %v152
    %194 = vmatprep.subr.mxu0 0.0
    %195 = vmatpush2.msra.mxu0 0.0
    %196 = vmatprep.subr.mxu0 0.0
    %197 = vmatpush2.msra.mxu0 0.0
    %198 = vmatprep.subr.mxu0 0.0
    %199 = vmatpush2.msra.mxu0 0.0
    %200 = vmatprep.subr.mxu0 0.0
    %201 = vmatpush2.msra.mxu0 0.0
    %202 = vmatprep.subr.mxu0 0.0
    %203 = vmatpush2.msra.mxu0 0.0
    %204 = vmatprep.subr.mxu0 0.0
    %205 = vmatpush2.msra.mxu0 0.0
    %206 = vmatprep.subr.mxu0 0.0
    %207 = vmatpush2.msra.mxu0 0.0
    %208 = vmatprep.subr.mxu0 0.0
    %209 = vmatpush2.msra.mxu0 0.0
    %210 = vmatprep.subr.mxu0 0.0
    %211 = vmatpush2.msra.mxu0 0.0
    %212 = vmatprep.subr.mxu0 0.0
    %213 = vmatpush2.msra.mxu0 0.0
    %214 = vmatprep.subr.mxu0 0.0
    %215 = vmatpush2.msra.mxu0 0.0
    %216 = vmatprep.subr.mxu0 0.0
    %217 = vmatpush2.msra.mxu0 0.0
    %218 = vmatprep.subr.mxu0 0.0
    %219 = vmatpush2.msra.mxu0 0.0
    %220 = vmatprep.subr.mxu0 0.0
    %221 = vmatpush2.msra.mxu0 0.0
    %222 = vmatprep.subr.mxu0 0.0
    %223 = vmatpush2.msra.mxu0 0.0
    %224 = vmatprep.subr.mxu0 0.0
    %225 = vmatpush2.msra.mxu0 0.0
    %226 = vmatprep.mubr.f32.mxu0 0.0
    %227 = vmatmul.mubr.f32.gmra.mxu0 %v160
    %v228 = vpop.f32.mrf.mxu0
    %v229 = vadd.f32 0.0, %v228
    %v230 = vpop.f32.mrf.mxu0
    %231 = vdwg.mxu0
    %v232 = vadd.f32 %v158, %v229
    %v233 = vxor.u32 %v232, 2147483648
    %v234 = vmul.f32 %v233, 1.442695
    %v235 = vpow.pop %v234
    %v236 = vadd.f32 %v235, 1.0
    %v237 = vrcp.pop %v236
    %v238 = vmul.f32 1.0, %v237
    %v240 = vlaneseq
    %v241 = vshrl.u32 %v240, 7
    %v242 = vsub.s32 0, %v241
    %v243 = vrot.slane %v156, %v242
    %244 = vrot.lane.b32.xlu0 %v243, 64
    %v245 = vpop.permute.xlu0 %244
    %v247 = vadd.f32 %v229, %v245
    %v250 = vunpack.c.l.s4 1966171168
    %v251 = vunpack.c.0.s8 %v250
    %v252 = vlaneseq
    %v253 = vshrl.u32 %v252, 7
    %v254 = vsub.s32 %v251, %v253
    %v255 = vrot.slane %v247, %v254
    %v257 = vunpack.c.l.s4 1966171168
    %v258 = vunpack.c.0.s8 %v257
    %v259 = vlaneseq
    %v260 = vshrl.u32 %v259, 7
    %v261 = vsub.s32 %v258, %v260
    %v262 = vrot.slane %v255, %v261
    %263 = vrot.lane.b32.xlu0 %v262, 64
    %v264 = vpop.permute.xlu0 %263
    %v266 = vmul.f32 %v238, %v264
    %268 = vrot.lane.b32.xlu0 %v266, 64
    %v269 = vpop.permute.xlu0 %268
    %v271 = vadd.f32 %v158, %v269
    %v272 = vtanh.pop %v271
    %v273 = vsub.f32 1.0, %v238
    %275 = vrot.lane.b32.xlu0 %v272, 96
    %v276 = vpop.permute.xlu0 %275
    %v278 = vmul.f32 %v273, %v276
    %279 = vrot.lane.b32.xlu0 %v157, 32
    %v280 = vpop.permute.xlu0 %279
    %v282 = vmul.f32 %v238, %v280
    %v283 = vadd.f32 %v278, %v282
    %v285 = vlaneseq
    %v286 = vshrl.u32 %v285, 7
    %v287 = vsub.s32 0, %v286
    %v288 = vrot.slane %v283, %v287
    %289 = vrot.lane.b32.xlu0 %v288, 96
    %v290 = vpop.permute.xlu0 %289
    %vm292 = vcmask 253952
    %293 = vst.msk [vmem:[#allocation10] sm:$0x1] %vm292, %v290
    %294 = vst.msk [vmem:[#allocation2] sm:$0x1] %vm292, %v290
    // Predicated region
    $region42: #{tpu_custom_call.1} parent=1 // pred_check
      _
    $region43: #{tpu_custom_call.1} parent=1 // pred_check_branch
      %296 = sbr.rel (0) target = $region45
    $region44: #{tpu_custom_call.1} parent=1 // pred_region
      %s298 = ssub.s32 16, 16
      %299 = vsyncadd [#allocation6], %s298
      %s301 = sshll.u32 [#allocation10], 4
      %s302 = int_to_ptr.vmem [resolvable:$true] %s301
      %304 = dma.vmem_to_hbm [thread:$0]  %s302, 16, %s6, [#allocation6]
    $region45: #{tpu_custom_call.1} parent=1 // pred_fallthru
      _
    // Predicated region
    $region46: #{tpu_custom_call.1} parent=1 // pred_check
      _
    $region47: #{tpu_custom_call.1} parent=1 // pred_check_branch
      %306 = sbr.rel (0) target = $region49
    $region48: #{tpu_custom_call.1} parent=1 // pred_region
      %307 = dma.done [#allocation6], 16
    $region49: #{tpu_custom_call.1} parent=1 // pred_fallthru
      _
    %308 = vsyncpa [#allocation5], 1
    %309 = vsyncpa [#allocation8], 1
    %310 = vsyncpa [#allocation6], 1

</llo_original>
